<compile_context>
chip_gen: v7x
topology: tpu7x:2x2x1
jax: 0.10.0
libtpu: 0.0.40
codegen_flags: <defaults>
</compile_context>

<pallas_src>
import functools

import jax
import jax.numpy as jnp
from jax.experimental import pallas as pl
from jax.experimental.pallas import tpu as pltpu

LANE = 128
DEFAULT_TILE_M = 2048   # 2048x128 f32 tile: ~4 MiB double-buffered for 2 inputs


def _round_up(n, m):
    return ((n + m - 1) // m) * m


def _num_tensorcores():
    """2 for dual-TensorCore chips (v7x); 1 for v5e / v6e (single TC)."""
    try:
        devs = jax.devices()
        if not devs or devs[0].platform != "tpu":
            return 1
        kind = str(getattr(devs[0], "device_kind", "")).lower()
        if "v7" in kind or "tpu7" in kind:
            return 2
    except Exception:  # defensive: never let detection break the kernel path
        pass
    return 1


def _bce_sum_kernel(recon_ref, x_ref, out_ref, *, tiles_per_core, tile_rows,
                    full_rows):
    """Per-core unnegated-BCE partial sums accumulated into an (8, LANE) block."""
    c = pl.program_id(0)   # core split
    j = pl.program_id(1)   # tile index within this core ("arbitrary" reduction)

    @pl.when(j == 0)
    def _init():
        out_ref[...] = jnp.zeros_like(out_ref)

    r = recon_ref[...].astype(jnp.float32)
    xv = x_ref[...].astype(jnp.float32)

    # PyTorch F.binary_cross_entropy clamps each log term at -100.
    # (Only defined for recon_x in [0, 1]; values outside give NaN, same as
    # the PyTorch reference.)
    log_r = jnp.maximum(jnp.log(r), -100.0)
    log_1mr = jnp.maximum(jnp.log(1.0 - r), -100.0)
    # BCE = -(x*log_r + (1-x)*log_1mr) = -(x*(log_r - log_1mr) + log_1mr).
    # Accumulate the unnegated inner term; negate once in the JAX epilogue.
    val = xv * (log_r - log_1mr) + log_1mr

    t = c * tiles_per_core + j                 # unclamped global tile id
    is_interior = (t + 1) * tile_rows <= full_rows

    @pl.when(is_interior)
    def _fast():
        # Mask-free hot path: pure VPU adds folding sublane groups onto one
        # (8, LANE) accumulator block (no per-tile cross-lane reduce).
        out_ref[...] += val.reshape(tile_rows // 8, 8, LANE).sum(axis=0)

    @pl.when(jnp.logical_not(is_interior))
    def _edge():
        # Covers (a) the tail tile overhanging the (full_rows, LANE) slab and
        # (b) fully-clamped duplicate tiles when the grid overshoots. Overhang
        # rows hold unspecified data (log() may be NaN), so this must stay a
        # lane select (jnp.where) — never multiply-by-mask.
        row_ids = jax.lax.broadcasted_iota(jnp.int32, (tile_rows, LANE), 0)
        keep = (t * tile_rows + row_ids) < full_rows
        masked = jnp.where(keep, val, 0.0)
        out_ref[...] += masked.reshape(tile_rows // 8, 8, LANE).sum(axis=0)


def compression_loss(recon_x, x, mu, logvar, *, tile_m=DEFAULT_TILE_M):
    """BCE(recon_x, x, reduction='sum') + KLD(mu, logvar) -> f32 scalar."""
    total = recon_x.size
    full_rows = total // LANE
    rem = total - full_rows * LANE

    r_flat = recon_x.reshape(-1)
    x_flat = x.reshape(-1)

    bce_unneg = jnp.float32(0.0)

    if full_rows > 0:
        main = full_rows * LANE
        r_main = r_flat if rem == 0 else r_flat[:main]
        x_main = x_flat if rem == 0 else x_flat[:main]
        r2 = r_main.reshape(full_rows, LANE)   # zero-copy when rem == 0
        x2 = x_main.reshape(full_rows, LANE)

        # Sublane granularity: 8 rows for 4-byte dtypes, 16 for bf16/f16, etc.
        # (also keeps the reshape(tile_rows//8, 8, LANE) fold legal).
        itemsize = min(recon_x.dtype.itemsize, x.dtype.itemsize)
        sub = max(8, 32 // max(1, itemsize))
        tile_rows = max(sub,
                        min(_round_up(tile_m, sub), _round_up(full_rows, sub)))

        num_cores = _num_tensorcores()
        num_tiles = pl.cdiv(full_rows, tile_rows)
        tiles_per_core = pl.cdiv(num_tiles, num_cores)
        last_tile = num_tiles - 1

        def data_map(c, j):
            # Clamp so no DMA ever starts fully out of bounds; clamped
            # duplicate tiles contribute zero via the in-kernel edge mask.
            return (jnp.minimum(c * tiles_per_core + j, last_tile), 0)

        kernel = functools.partial(
            _bce_sum_kernel, tiles_per_core=tiles_per_core,
            tile_rows=tile_rows, full_rows=full_rows)

        if num_cores > 1:
            # Real per-TensorCore split on v7x: only CORE_PARALLEL changes
            # codegen (plain "parallel" vs "arbitrary" is a no-op).
            dim_sem = (getattr(pltpu, "CORE_PARALLEL", "parallel"),
                       getattr(pltpu, "ARBITRARY", "arbitrary"))
        else:
            dim_sem = ("arbitrary", "arbitrary")

        # VMEM budget: 2 inputs x 2 buffers x tile_rows x 128 x 4 B <= ~4 MiB
        # at the default tile — fits every generation's scoped default, so no
        # explicit vmem_limit_bytes needed.
        partials = pl.pallas_call(
            kernel,
            out_shape=jax.ShapeDtypeStruct((num_cores * 8, LANE), jnp.float32),
            grid_spec=pltpu.PrefetchScalarGridSpec(
                num_scalar_prefetch=0,
                grid=(num_cores, tiles_per_core),
                in_specs=[
                    pl.BlockSpec((tile_rows, LANE), data_map),
                    pl.BlockSpec((tile_rows, LANE), data_map),
                ],
                out_specs=pl.BlockSpec((8, LANE), lambda c, j: (c, 0)),
            ),
            compiler_params=pltpu.CompilerParams(dimension_semantics=dim_sem),
        )(r2, x2)

        bce_unneg = jnp.sum(partials)

    if rem:
        # <128-element remainder: do it in plain JAX instead of paying a
        # full-tensor pad-concatenate copy on the (bandwidth-bound) kernel path.
        r_t = r_flat[full_rows * LANE:].astype(jnp.float32)
        x_t = x_flat[full_rows * LANE:].astype(jnp.float32)
        lr = jnp.maximum(jnp.log(r_t), -100.0)
        l1 = jnp.maximum(jnp.log(1.0 - r_t), -100.0)
        bce_unneg = bce_unneg + jnp.sum(x_t * (lr - l1) + l1)

    bce_sum = -bce_unneg  # single negation for the whole BCE term

    # Tiny KLD over the (B, Z) latent — negligible vs. the image-sized BCE.
    mu_f = mu.astype(jnp.float32)
    lv_f = logvar.astype(jnp.float32)
    kld = -0.5 * jnp.sum(1.0 + lv_f - mu_f * mu_f - jnp.exp(lv_f))
    return bce_sum + kld


def _reference_loss(recon_x, x, mu, logvar):
    r = recon_x.astype(jnp.float32)
    xx = x.astype(jnp.float32)
    bce = -(xx * jnp.maximum(jnp.log(r), -100.0)
            + (1.0 - xx) * jnp.maximum(jnp.log(1.0 - r), -100.0))
    kld = -0.5 * jnp.sum(1.0 + logvar - mu ** 2 - jnp.exp(logvar))
    return jnp.sum(bce) + kld


if __name__ == "__main__":
    key = jax.random.PRNGKey(0)
    k1, k2, k3, k4 = jax.random.split(key, 4)

    B, C, H, W = 2, 4, 16, 16      # recon_x / x: NCHW
    Z = 32                         # latent dim for mu / logvar

    recon_x = jax.nn.sigmoid(jax.random.normal(k1, (B, C, H, W), jnp.float32))
    x = jax.random.uniform(k2, (B, C, H, W), jnp.float32)
    mu = jax.random.normal(k3, (B, Z), jnp.float32)
    logvar = 0.5 * jax.random.normal(k4, (B, Z), jnp.float32)

    loss_fn = jax.jit(compression_loss)
    loss = loss_fn(recon_x, x, mu, logvar)
    loss = jax.block_until_ready(loss)

    ref = _reference_loss(recon_x, x, mu, logvar)
    assert jnp.allclose(loss, ref, rtol=1e-5, atol=1e-3), (loss, ref)

    print("KERNEL_OK")
</pallas_src>

<mosaic_0001>
module attributes {stable_mosaic.version = 11 : i64} {
  func.func @_bce_sum_kernel(%arg0: i32, %arg1: i32, %arg2: memref<16x128xf32, #tpu.memory_space<vmem>>, %arg3: memref<16x128xf32, #tpu.memory_space<vmem>>, %arg4: memref<8x128xf32, #tpu.memory_space<vmem>>) attributes {dimension_semantics = [#tpu.dimension_semantics<arbitrary>, #tpu.dimension_semantics<arbitrary>], iteration_bounds = array<i64: 1, 1>, scalar_prefetch = 0 : i64, scratch_operands = 0 : i64, tpu.core_type = #tpu.core_type<tc>, window_params = [{transform_indices = @transform_0, window_bounds = array<i64: 16, 128>}, {transform_indices = @transform_1, window_bounds = array<i64: 16, 128>}, {transform_indices = @transform_2, window_bounds = array<i64: 8, 128>}]} {
    %c0_i32 = arith.constant 0 : i32
    %0 = arith.cmpi eq, %arg1, %c0_i32 : i32
    %1 = arith.extui %0 : i1 to i32
    %c0_i32_0 = arith.constant 0 : i32
    %2 = arith.cmpi ne, %1, %c0_i32_0 : i32
    scf.if %2 {
      %cst_10 = arith.constant 0.000000e+00 : f32
      %26 = vector.broadcast %cst_10 : f32 to vector<8x128xf32>
      %c0_11 = arith.constant 0 : index
      %c0_12 = arith.constant 0 : index
      %27 = vector.load %arg4[%c0_11, %c0_12] : memref<8x128xf32, #tpu.memory_space<vmem>>, vector<8x128xf32>
      tpu.vector_store %arg4[%c0_11, %c0_12], %26 {strides = array<i32>} : memref<8x128xf32, #tpu.memory_space<vmem>>, vector<8x128xf32>,
    } else {
    }
    %c0 = arith.constant 0 : index
    %c0_1 = arith.constant 0 : index
    %3 = vector.load %arg2[%c0, %c0_1] : memref<16x128xf32, #tpu.memory_space<vmem>>, vector<16x128xf32>
    %c0_2 = arith.constant 0 : index
    %c0_3 = arith.constant 0 : index
    %4 = vector.load %arg3[%c0_2, %c0_3] : memref<16x128xf32, #tpu.memory_space<vmem>>, vector<16x128xf32>
    %5 = math.log %3 : vector<16x128xf32>
    %cst = arith.constant -1.000000e+02 : f32
    %6 = vector.broadcast %cst : f32 to vector<16x128xf32>
    %7 = arith.maximumf %5, %6 : vector<16x128xf32>
    %cst_4 = arith.constant 1.000000e+00 : f32
    %8 = vector.broadcast %cst_4 : f32 to vector<16x128xf32>
    %9 = arith.subf %8, %3 : vector<16x128xf32>
    %10 = math.log %9 : vector<16x128xf32>
    %cst_5 = arith.constant -1.000000e+02 : f32
    %11 = vector.broadcast %cst_5 : f32 to vector<16x128xf32>
    %12 = arith.maximumf %10, %11 : vector<16x128xf32>
    %13 = arith.subf %7, %12 : vector<16x128xf32>
    %14 = arith.mulf %4, %13 : vector<16x128xf32>
    %15 = arith.addf %14, %12 : vector<16x128xf32>
    %c1_i32 = arith.constant 1 : i32
    %16 = arith.muli %arg0, %c1_i32 : i32
    %17 = arith.addi %16, %arg1 : i32
    %c1_i32_6 = arith.constant 1 : i32
    %18 = arith.addi %17, %c1_i32_6 : i32
    %c16_i32 = arith.constant 16 : i32
    %19 = arith.muli %18, %c16_i32 : i32
    %c16_i32_7 = arith.constant 16 : i32
    %20 = arith.cmpi sle, %19, %c16_i32_7 : i32
    %21 = arith.extui %20 : i1 to i32
    %c0_i32_8 = arith.constant 0 : i32
    %22 = arith.cmpi ne, %21, %c0_i32_8 : i32
    scf.if %22 {
      %c0_10 = arith.constant 0 : index
      %c0_11 = arith.constant 0 : index
      %26 = vector.load %arg4[%c0_10, %c0_11] : memref<8x128xf32, #tpu.memory_space<vmem>>, vector<8x128xf32>
      %27 = vector.shape_cast %15 : vector<16x128xf32> to vector<2x8x128xf32>
      %cst_12 = arith.constant dense<0.000000e+00> : vector<8x128xf32>
      %28 = vector.multi_reduction <add>, %27, %cst_12 [0] : vector<2x8x128xf32> to vector<8x128xf32>
      %29 = arith.addf %26, %28 : vector<8x128xf32>
      %c0_13 = arith.constant 0 : index
      %c0_14 = arith.constant 0 : index
      %30 = vector.load %arg4[%c0_13, %c0_14] : memref<8x128xf32, #tpu.memory_space<vmem>>, vector<8x128xf32>
      tpu.vector_store %arg4[%c0_13, %c0_14], %29 {strides = array<i32>} : memref<8x128xf32, #tpu.memory_space<vmem>>, vector<8x128xf32>,
    } else {
    }
    %true = arith.constant true
    %23 = arith.xori %20, %true : i1
    %24 = arith.extui %23 : i1 to i32
    %c0_i32_9 = arith.constant 0 : i32
    %25 = arith.cmpi ne, %24, %c0_i32_9 : i32
    scf.if %25 {
      %26 = tpu.iota {dimensions = array<i32: 0>} : vector<16x128xi32>
      %c16_i32_10 = arith.constant 16 : i32
      %27 = arith.muli %17, %c16_i32_10 : i32
      %28 = vector.broadcast %27 : i32 to vector<16x128xi32>
      %29 = arith.addi %28, %26 : vector<16x128xi32>
      %c16_i32_11 = arith.constant 16 : i32
      %30 = vector.broadcast %c16_i32_11 : i32 to vector<16x128xi32>
      %31 = arith.cmpi slt, %29, %30 : vector<16x128xi32>
      %cst_12 = arith.constant 0.000000e+00 : f32
      %32 = vector.broadcast %cst_12 : f32 to vector<16x128xf32>
      %33 = arith.select %31, %15, %32 : vector<16x128xi1>, vector<16x128xf32>
      %c0_13 = arith.constant 0 : index
      %c0_14 = arith.constant 0 : index
      %34 = vector.load %arg4[%c0_13, %c0_14] : memref<8x128xf32, #tpu.memory_space<vmem>>, vector<8x128xf32>
      %35 = vector.shape_cast %33 : vector<16x128xf32> to vector<2x8x128xf32>
      %cst_15 = arith.constant dense<0.000000e+00> : vector<8x128xf32>
      %36 = vector.multi_reduction <add>, %35, %cst_15 [0] : vector<2x8x128xf32> to vector<8x128xf32>
      %37 = arith.addf %34, %36 : vector<8x128xf32>
      %c0_16 = arith.constant 0 : index
      %c0_17 = arith.constant 0 : index
      %38 = vector.load %arg4[%c0_16, %c0_17] : memref<8x128xf32, #tpu.memory_space<vmem>>, vector<8x128xf32>
      tpu.vector_store %arg4[%c0_16, %c0_17], %37 {strides = array<i32>} : memref<8x128xf32, #tpu.memory_space<vmem>>, vector<8x128xf32>,
    } else {
    }
    return
  }
  func.func @transform_0(%arg0: i32, %arg1: i32) -> (i32, i32) {
    %c1_i32 = arith.constant 1 : i32
    %0 = arith.muli %arg0, %c1_i32 : i32
    %1 = arith.addi %0, %arg1 : i32
    %c0_i32 = arith.constant 0 : i32
    %2 = arith.minsi %1, %c0_i32 : i32
    %c0_i32_0 = arith.constant 0 : i32
    %c0_i32_1 = arith.constant 0 : i32
    return %2, %c0_i32_0 : i32, i32
  }
  func.func @transform_1(%arg0: i32, %arg1: i32) -> (i32, i32) {
    %c1_i32 = arith.constant 1 : i32
    %0 = arith.muli %arg0, %c1_i32 : i32
    %1 = arith.addi %0, %arg1 : i32
    %c0_i32 = arith.constant 0 : i32
    %2 = arith.minsi %1, %c0_i32 : i32
    %c0_i32_0 = arith.constant 0 : i32
    %c0_i32_1 = arith.constant 0 : i32
    return %2, %c0_i32_0 : i32, i32
  }
  func.func @transform_2(%arg0: i32, %arg1: i32) -> (i32, i32) {
    %c0_i32 = arith.constant 0 : i32
    %c0_i32_0 = arith.constant 0 : i32
    return %arg0, %c0_i32 : i32, i32
  }
}

</mosaic_0001>

<llo_original>
// kernel: compression_loss.1
$region0: #{compression_loss.1}
  #allocation0 [shape = 'u32[]', space=smem, size = 0x4, offset = 0x4, fixed_abs, tag = 'smem constant byte address 0x4 - core index']
  #allocation1 [shape = 'u32[144,128]{1,0:T(1,128)}', space=vmem, size = 0x12000, scoped, tag = 'internal scratch']
  %s0 = inlined_call_operand.vmem [shape: f32[16,128], index: 0, kind: input, shape index: {}]
  %s1 = inlined_call_operand.vmem [shape: f32[16,128], index: 1, kind: input, shape index: {}]
  %s2 = inlined_call_operand.vmem [shape: f32[8,128], index: 2, kind: output, shape index: {}]
  %s3 = sld [smem:[#allocation0]]
  $region30: #{compression_loss.1} parent=0
    _
  %s5 = ssub.s32 1, %s3
  %s6 = scalar_select 0, %s5, %s3
  // Predicated region
  $region2: #{compression_loss.1} parent=0 // pred_check
    _
  $region3: #{compression_loss.1} parent=0 // pred_check_branch
    %8 = sbr.rel (0) target = $region5
  $region4: #{compression_loss.1} parent=0 // pred_region
    %s9 = sadd.s32 0, 0
    %p10 = scmp.lt.s32.totalorder %s9, 0
    %s11 = scalar_select %p10, %s9, 0
    %s12 = smul.u32 2, %s11
    %p13 = scmp.lt.s32.totalorder %s12, 1
    %s14 = scalar_select %p13, %s12, 1
    %s15 = smul.addr %s14, 8
    %s16 = scalar_lea.vmem %s0, %s15
    %s17 = sadd.s32 0, 0
    %p18 = scmp.lt.s32.totalorder %s17, 0
    %s19 = scalar_select %p18, %s17, 0
    %s20 = smul.u32 2, %s19
  $region5: #{compression_loss.1} parent=0 // pred_fallthru
    _
  // Predicated region
  $region6: #{compression_loss.1} parent=0 // pred_check
    _
  $region7: #{compression_loss.1} parent=0 // pred_check_branch
    %22 = sbr.rel (0) target = $region9
  $region8: #{compression_loss.1} parent=0 // pred_region
    %s23 = sadd.s32 0, 0
    %p24 = scmp.lt.s32.totalorder %s23, 0
    %s25 = scalar_select %p24, %s23, 0
    %s26 = smul.u32 2, %s25
    %p27 = scmp.lt.s32.totalorder %s26, 1
    %s28 = scalar_select %p27, %s26, 1
    %s29 = smul.addr %s28, 8
    %s30 = scalar_lea.vmem %s1, %s29
    %s31 = sadd.s32 0, 0
    %p32 = scmp.lt.s32.totalorder %s31, 0
    %s33 = scalar_select %p32, %s31, 0
    %s34 = smul.u32 2, %s33
  $region9: #{compression_loss.1} parent=0 // pred_fallthru
    _
  %s35 = sadd.s32 0, 0
  %p36 = scmp.lt.s32.totalorder %s35, 0
  %s37 = scalar_select %p36, %s35, 0
  %s38 = smul.u32 2, %s37
  %p39 = scmp.lt.s32.totalorder %s38, 1
  %s40 = scalar_select %p39, %s38, 1
  %s41 = smul.addr %s40, 8
  %s42 = scalar_lea.vmem %s0, %s41
  %s43 = sadd.s32 0, 0
  %p44 = scmp.lt.s32.totalorder %s43, 0
  %s45 = scalar_select %p44, %s43, 0
  %s46 = smul.u32 2, %s45
  %p47 = scmp.lt.s32.totalorder %s46, 1
  %s48 = scalar_select %p47, %s46, 1
  %s49 = smul.addr %s48, 8
  %s50 = scalar_lea.vmem %s1, %s49
  %s51 = sadd.s32 0, 0
  %p52 = scmp.lt.s32.totalorder %s51, 0
  %s53 = scalar_select %p52, %s51, 0
  %s54 = smul.u32 2, %s53
  %p55 = scmp.lt.s32.totalorder %s54, 1
  %s56 = scalar_select %p55, %s54, 1
  %s57 = smul.addr %s56, 8
  %s58 = scalar_lea.vmem %s0, %s57
  %s59 = sadd.s32 0, 0
  %p60 = scmp.lt.s32.totalorder %s59, 0
  %s61 = scalar_select %p60, %s59, 0
  %s62 = smul.u32 2, %s61
  %s63 = sadd.s32 0, 0
  %p64 = scmp.lt.s32.totalorder %s63, 0
  %s65 = scalar_select %p64, %s63, 0
  %s66 = smul.u32 2, %s65
  %p67 = scmp.lt.s32.totalorder %s66, 1
  %s68 = scalar_select %p67, %s66, 1
  %s69 = smul.addr %s68, 8
  %s70 = scalar_lea.vmem %s1, %s69
  %s71 = sadd.s32 0, 0
  %p72 = scmp.lt.s32.totalorder %s71, 0
  %s73 = scalar_select %p72, %s71, 0
  %s74 = smul.u32 2, %s73
  %p75 = scmp.eq.s32.totalorder 0, 0
  // Predicated region
  $region10: #{compression_loss.1} parent=0 // pred_check
    %p76 = pneg %p75
  $region11: #{compression_loss.1} parent=0 // pred_check_branch
    %78 = sbr.rel (%p76) target = $region13
  $region12: #{compression_loss.1} parent=0 // pred_region
    %79 = vst [vmem:[%s2] sm:$0xff] 0.0
  $region13: #{compression_loss.1} parent=0 // pred_fallthru
    _
  %v80 = vld [vmem:[%s58] sm:$0xff]
  %v81 = vld [vmem:[%s58 + $0x8] sm:$0xff]
  %v82 = vld [vmem:[%s70] sm:$0xff]
  %v83 = vld [vmem:[%s70 + $0x8] sm:$0xff]
  %v84 = vlog2.pop %v80
  %v85 = vmul.f32 %v84, 0.6931472
  %v86 = vlog2.pop %v81
  %v87 = vmul.f32 %v86, 0.6931472
  %v88 = vmax.f32 %v85, -100.0
  %v89 = vmax.f32 %v87, -100.0
  %v90 = vsub.f32 1.0, %v80
  %v91 = vsub.f32 1.0, %v81
  %v92 = vlog2.pop %v90
  %v93 = vmul.f32 %v92, 0.6931472
  %v94 = vlog2.pop %v91
  %v95 = vmul.f32 %v94, 0.6931472
  %v96 = vmax.f32 %v93, -100.0
  %v97 = vmax.f32 %v95, -100.0
  %v98 = vsub.f32 %v88, %v96
  %v99 = vsub.f32 %v89, %v97
  %v100 = vmul.f32 %v82, %v98
  %v101 = vmul.f32 %v83, %v99
  %v102 = vadd.f32 %v100, %v96
  %v103 = vadd.f32 %v101, %v97
  %s104 = sadd.s32 0, 0
  %s105 = sadd.s32 %s104, 1
  %s106 = smul.u32 %s105, 16
  %p107 = scmp.le.s32.totalorder %s106, 16
  // Predicated region
  $region14: #{compression_loss.1} parent=0 // pred_check
    %p108 = pneg %p107
  $region15: #{compression_loss.1} parent=0 // pred_check_branch
    %110 = sbr.rel (%p108) target = $region17
  $region16: #{compression_loss.1} parent=0 // pred_region
    %v111 = vld [vmem:[%s2] sm:$0xff]
    %v112 = vadd.f32 %v102, %v103
    %v113 = vadd.f32 %v111, %v112
    %114 = vst [vmem:[%s2] sm:$0xff] %v113
  $region17: #{compression_loss.1} parent=0 // pred_fallthru
    _
  %p115 = scmp.gt.s32.totalorder %s106, 16
  // Predicated region
  $region18: #{compression_loss.1} parent=0 // pred_check
    %p116 = pneg %p115
  $region19: #{compression_loss.1} parent=0 // pred_check_branch
    %118 = sbr.rel (%p116) target = $region21
  $region20: #{compression_loss.1} parent=0 // pred_region
    %v119 = vlaneseq
    %v120 = vshrl.u32 %v119, 7
    %v121 = vadd.s32 %v120, 8
    %s122 = smul.u32 %s104, 16
    %v123 = vstv %s122
    %v124 = vadd.s32 %v123, %v120
    %v125 = vadd.s32 %v123, %v121
    %vm126 = vcmp.lt.s32.totalorder %v124, 16
    %vm127 = vcmp.lt.s32.totalorder %v125, 16
    %v128 = vsel %vm126, %v102, 0.0
    %v129 = vsel %vm127, %v103, 0.0
    %v130 = vld [vmem:[%s2] sm:$0xff]
    %v131 = vadd.f32 %v128, %v129
    %v132 = vadd.f32 %v130, %v131
    %133 = vst [vmem:[%s2] sm:$0xff] %v132
  $region21: #{compression_loss.1} parent=0 // pred_fallthru
    _
  // Predicated region
  $region22: #{compression_loss.1} parent=0 // pred_check
    _
  $region23: #{compression_loss.1} parent=0 // pred_check_branch
    %135 = sbr.rel (0) target = $region25
  $region24: #{compression_loss.1} parent=0 // pred_region
    _
  $region25: #{compression_loss.1} parent=0 // pred_fallthru
    _
  // Predicated region
  $region26: #{compression_loss.1} parent=0 // pred_check
    _
  $region27: #{compression_loss.1} parent=0 // pred_check_branch
    %137 = sbr.rel (0) target = $region29
  $region28: #{compression_loss.1} parent=0 // pred_region
    _
  $region29: #{compression_loss.1} parent=0 // pred_fallthru
    _

</llo_original>
